<compile_context>
chip_gen: v6e
topology: v6e:2x2x1
jax: 0.10.0
libtpu: 0.0.40
codegen_flags: <defaults>
</compile_context>

<pallas_src>
import jax
import jax.numpy as jnp
from jax.experimental import pallas as pl
from jax.experimental.pallas import tpu as pltpu


_COLS = 512                               # lane-dense: large multiple of 128
_TARGET_BLOCK_BYTES = 4 * 1024 * 1024     # ~4 MiB blocks (good on v5e/v6e/v7x)
_VMEM_LIMIT_BYTES = 40 * 1024 * 1024      # headroom above the 4 live buffers


def _lambda_kernel(x_ref, o_ref):
    """The concrete `f` wrapped by Lambda (SiLU), applied to one tile."""
    x = x_ref[...].astype(jnp.float32)    # f32 math (safe on v5e; DMA-bound anyway)
    # exp -> EUP; approximate reciprocal -> single EUP op (no VPU refinement).
    sig = pl.reciprocal(1.0 + jnp.exp(-x), approx=True)
    o_ref[...] = (x * sig).astype(o_ref.dtype)


def _plan(rows, dtype):
    """Rows-per-block for a (rows, _COLS) slab."""
    itemsize = jnp.dtype(dtype).itemsize
    sublane = max(8, 32 // itemsize)      # 8 for f32, 16 for bf16, 32 for i8
    if rows <= sublane:
        return rows                       # single block == full array dims
    row_bytes = _COLS * itemsize
    tr = max(sublane, min(rows, _TARGET_BLOCK_BYTES // row_bytes))
    tr = max(sublane, (tr // sublane) * sublane)
    # Guarantee >= 2 grid steps when possible so both v7x TensorCores get work.
    half = pl.cdiv(pl.cdiv(rows, 2), sublane) * sublane
    return max(sublane, min(tr, half))


@jax.jit
def lambda_forward(x):
    """Apply Lambda(f) (f = SiLU) to a tensor using a Pallas TPU kernel."""
    orig_shape = x.shape
    n = x.size
    itemsize = jnp.dtype(x.dtype).itemsize

    flat = x.reshape(-1)
    rem = n % _COLS
    if rem:
        # Rare slow path (element count not a multiple of the lane width):
        # pad only the last partial row; silu(0) == 0 so padding is benign.
        flat = jnp.pad(flat, (0, _COLS - rem))
    rows = flat.size // _COLS
    x2d = flat.reshape(rows, _COLS)       # zero-copy reshape on the fast path

    tr = _plan(rows, x.dtype)
    grid = pl.cdiv(rows, tr)              # ragged tail handled by edge masking

    out2d = pl.pallas_call(
        _lambda_kernel,
        out_shape=jax.ShapeDtypeStruct((rows, _COLS), x.dtype),
        grid_spec=pltpu.PrefetchScalarGridSpec(
            num_scalar_prefetch=0,
            grid=(grid,),
            in_specs=[pl.BlockSpec((tr, _COLS), lambda i: (i, 0))],
            out_specs=pl.BlockSpec((tr, _COLS), lambda i: (i, 0)),
        ),
        compiler_params=pltpu.CompilerParams(
            dimension_semantics=("parallel",),   # independent tiles -> megacore
            vmem_limit_bytes=_VMEM_LIMIT_BYTES,
        ),
        cost_estimate=pl.CostEstimate(
            flops=3 * n,
            transcendentals=2 * n,               # exp + reciprocal
            bytes_accessed=2 * n * itemsize,
        ),
    )(x2d)

    out = out2d.reshape(-1)
    if rem:
        out = out[:n]
    return out.reshape(orig_shape)


if __name__ == "__main__":
    key = jax.random.PRNGKey(0)
    # Small NCHW input consistent with a conv-style pipeline.
    x = jax.random.normal(key, (2, 4, 16, 16), dtype=jnp.float32)

    out = lambda_forward(x)
    jax.block_until_ready(out)

    # Reference: Lambda(f)(x) == f(x).  Tolerance accounts for the EUP
    # approximate reciprocal (pl.reciprocal(approx=True)) used in-kernel.
    ref = x * jax.nn.sigmoid(x)
    assert out.shape == x.shape and out.dtype == x.dtype
    assert jnp.allclose(out, ref, atol=2e-2, rtol=2e-2)
    assert jnp.isfinite(out).all()

    print("KERNEL_OK")
</pallas_src>

<mosaic_0001>
module attributes {stable_mosaic.version = 11 : i64} {
  func.func @_lambda_kernel(%arg0: i32, %arg1: memref<4x512xf32, #tpu.memory_space<vmem>>, %arg2: memref<4x512xf32, #tpu.memory_space<vmem>>) attributes {dimension_semantics = [#tpu.dimension_semantics<parallel>], iteration_bounds = array<i64: 1>, scalar_prefetch = 0 : i64, scratch_operands = 0 : i64, tpu.core_type = #tpu.core_type<tc>, window_params = [{transform_indices = @transform_0, window_bounds = array<i64: 4, 512>}, {transform_indices = @transform_1, window_bounds = array<i64: 4, 512>}]} {
    %c0 = arith.constant 0 : index
    %c0_0 = arith.constant 0 : index
    %0 = vector.load %arg1[%c0, %c0_0] : memref<4x512xf32, #tpu.memory_space<vmem>>, vector<4x512xf32>
    %cst = arith.constant 0.000000e+00 : f32
    %1 = vector.broadcast %cst : f32 to vector<4x512xf32>
    %2 = arith.subf %1, %0 : vector<4x512xf32>
    %3 = math.exp %2 : vector<4x512xf32>
    %cst_1 = arith.constant 1.000000e+00 : f32
    %4 = vector.broadcast %cst_1 : f32 to vector<4x512xf32>
    %5 = arith.addf %4, %3 : vector<4x512xf32>
    %6 = tpu.reciprocal %5 {approx = true} : vector<4x512xf32> -> vector<4x512xf32>
    %7 = arith.mulf %0, %6 : vector<4x512xf32>
    %c0_2 = arith.constant 0 : index
    %c0_3 = arith.constant 0 : index
    %8 = vector.load %arg2[%c0_2, %c0_3] : memref<4x512xf32, #tpu.memory_space<vmem>>, vector<4x512xf32>
    tpu.vector_store %arg2[%c0_2, %c0_3], %7 {strides = array<i32>} : memref<4x512xf32, #tpu.memory_space<vmem>>, vector<4x512xf32>,
    return
  }
  func.func @transform_0(%arg0: i32) -> (i32, i32) {
    %c0_i32 = arith.constant 0 : i32
    %c0_i32_0 = arith.constant 0 : i32
    return %arg0, %c0_i32 : i32, i32
  }
  func.func @transform_1(%arg0: i32) -> (i32, i32) {
    %c0_i32 = arith.constant 0 : i32
    %c0_i32_0 = arith.constant 0 : i32
    return %arg0, %c0_i32 : i32, i32
  }
}

</mosaic_0001>

<llo_original>
// kernel: lambda_forward.1
$region0: #{lambda_forward.1}
  #allocation0 [shape = 'u32[]', space=smem, size = 0x4, offset = 0x4, fixed_abs, tag = 'smem constant byte address 0x4 - core index']
  #allocation1 [shape = 'u32[144,128]{1,0:T(1,128)}', space=vmem, size = 0x12000, scoped, tag = 'internal scratch']
  %s0 = inlined_call_operand.vmem [shape: f32[4,512], index: 0, kind: input, shape index: {}]
  %s1 = inlined_call_operand.vmem [shape: f32[4,512], index: 1, kind: output, shape index: {}]
  %s2 = sld [smem:[#allocation0]]
  $region14: #{lambda_forward.1} parent=0
    _
  %s4 = ssub.s32 1, %s2
  %s5 = scalar_select 0, %s4, %s2
  // Predicated region
  $region2: #{lambda_forward.1} parent=0 // pred_check
    _
  $region3: #{lambda_forward.1} parent=0 // pred_check_branch
    %7 = sbr.rel (0) target = $region5
  $region4: #{lambda_forward.1} parent=0 // pred_region
    _
  $region5: #{lambda_forward.1} parent=0 // pred_fallthru
    _
  %v8 = vld [vmem:[%s0] sm:$0xff]
  %v9 = vld [vmem:[%s0 + $0x8] sm:$0xff]
  %v10 = vsub.f32 0.0, %v8
  %v11 = vsub.f32 0.0, %v9
  %v12 = vmul.f32 %v10, 1.442695
  %v13 = vpow.pop %v12
  %v14 = vmul.f32 %v11, 1.442695
  %v15 = vpow.pop %v14
  %v16 = vadd.f32 %v13, 1.0
  %v17 = vadd.f32 %v15, 1.0
  %v18 = vrcp.pop %v16
  %v19 = vrcp.pop %v17
  %v20 = vmul.f32 %v8, %v18
  %v21 = vmul.f32 %v9, %v19
  %22 = vst [vmem:[%s1] sm:$0xff] %v20
  %23 = vst [vmem:[%s1 + $0x8] sm:$0xff] %v21
  // Predicated region
  $region6: #{lambda_forward.1} parent=0 // pred_check
    _
  $region7: #{lambda_forward.1} parent=0 // pred_check_branch
    %25 = sbr.rel (0) target = $region9
  $region8: #{lambda_forward.1} parent=0 // pred_region
    _
  $region9: #{lambda_forward.1} parent=0 // pred_fallthru
    _
  // Predicated region
  $region10: #{lambda_forward.1} parent=0 // pred_check
    _
  $region11: #{lambda_forward.1} parent=0 // pred_check_branch
    %27 = sbr.rel (0) target = $region13
  $region12: #{lambda_forward.1} parent=0 // pred_region
    _
  $region13: #{lambda_forward.1} parent=0 // pred_fallthru
    _

</llo_original>
